<compile_context>
chip_gen: v7x
topology: tpu7x:2x2x1
jax: 0.10.0
libtpu: 0.0.40
codegen_flags: <defaults>
</compile_context>

<pallas_src>
import numpy as np
import jax
import jax.numpy as jnp
from jax.experimental import pallas as pl
from jax.experimental.pallas import tpu as pltpu

H = W = 7            # spatial size implied by x.view([-1, 1, 7, 7])
K = 7                # conv kernel size
PAD = 3              # "same" padding
HW = H * W           # 49 pixels per image
LANE = 128           # lane width
MAX_N_BLK = 2048     # images (lanes) per grid step: 49*2048*4 B ~= 400 KiB/block


def _round_up(a, b):
    return ((a + b - 1) // b) * b


def _build_fused_matrix(weight):
    """(1,1,7,7) conv weight -> (49,49) matrix M with M @ x_flat == x_flat + conv(x)_flat.

    M = I + A, where A[out_pix, in_pix] = w[ky, kx] for in = out + (ky-PAD, kx-PAD)
    when that input pixel is inside the 7x7 image (zero padding otherwise)."""
    w_flat = weight[0, 0].reshape(K * K).astype(jnp.float32)            # (49,)

    # Static index bookkeeping done in numpy (free at trace time).
    oy, ox = np.meshgrid(np.arange(H), np.arange(W), indexing="ij")     # (7,7)
    ky, kx = np.meshgrid(np.arange(K), np.arange(K), indexing="ij")     # (7,7)
    out_idx = (oy * W + ox).reshape(HW, 1)                              # (49,1)
    iy = oy.reshape(HW, 1) + (ky.reshape(1, K * K) - PAD)               # (49,49)
    ix = ox.reshape(HW, 1) + (kx.reshape(1, K * K) - PAD)               # (49,49)
    valid = (iy >= 0) & (iy < H) & (ix >= 0) & (ix < W)                 # (49,49) bool
    in_idx = np.clip(iy, 0, H - 1) * W + np.clip(ix, 0, W - 1)          # (49,49)

    vals = jnp.where(valid, jnp.broadcast_to(w_flat[None, :], (HW, K * K)), 0.0)
    A = jnp.zeros((HW, HW), jnp.float32).at[
        np.broadcast_to(out_idx, (HW, K * K)).ravel(), in_idx.ravel()
    ].add(vals.ravel())
    return A + jnp.eye(HW, dtype=jnp.float32)                           # fold +x residual


def _fused_conv_kernel(m_ref, x_ref, o_ref):
    """m_ref: (49, 49)    VMEM  (conv-as-matrix with residual folded in)
       x_ref: (49, N_BLK) VMEM  (pixels x images; batch is lane-dense)
       o_ref: (49, N_BLK) VMEM
    One small MXU matmul per block: o = M @ x."""
    o_ref[...] = jnp.dot(
        m_ref[...], x_ref[...], preferred_element_type=jnp.float32
    ).astype(o_ref.dtype)


@jax.jit
def simple_net_forward(x_nchw, weight):
    """x_nchw : (N, 1, 7, 7) float32
       weight : (1, 1, 7, 7) float32  (nn.Conv2d(1, 1, 7, bias=False).weight)
       returns: (N, 1, 7, 7) float32 == x + conv(x)"""
    n = x_nchw.shape[0]
    m = _build_fused_matrix(weight)                                     # (49, 49)

    # Lane-dense layout: (N,1,7,7) -> (49, N) with batch on the lane axis.
    x_t = x_nchw.reshape(n, HW).T.astype(jnp.float32)                   # (49, N)

    # Block the batch axis in 128-multiples; pad N up so blocks divide evenly.
    n_blk = min(MAX_N_BLK, _round_up(max(n, 1), LANE))
    n_total = _round_up(max(n, 1), n_blk)
    if n_total != n:
        x_t = jnp.pad(x_t, ((0, 0), (0, n_total - n)))                  # zero images

    out = pl.pallas_call(
        _fused_conv_kernel,
        out_shape=jax.ShapeDtypeStruct((HW, n_total), jnp.float32),
        grid=(n_total // n_blk,),
        in_specs=[
            pl.BlockSpec((HW, HW), lambda i: (0, 0)),       # fused weight matrix
            pl.BlockSpec((HW, n_blk), lambda i: (0, i)),    # batch block of images
        ],
        out_specs=pl.BlockSpec((HW, n_blk), lambda i: (0, i)),
        compiler_params=pltpu.CompilerParams(
            dimension_semantics=("parallel",),              # shard batch across cores
        ),
    )(m, x_t)

    # Back to NCHW, dropping the padded images.
    return out[:, :n].T.reshape(n, 1, H, W)


def _reference_forward(x_nchw, weight):
    """Pure-JAX reference (lax conv) for a correctness check."""
    a = jax.lax.conv_general_dilated(
        x_nchw, weight,
        window_strides=(1, 1),
        padding=((PAD, PAD), (PAD, PAD)),
        dimension_numbers=("NCHW", "OIHW", "NCHW"),
    )
    return x_nchw + a


if __name__ == "__main__":
    key = jax.random.PRNGKey(0)
    kx, kw = jax.random.split(key)

    # Small example consistent with x.view([-1, 1, 7, 7]): batch of 8 images.
    x = jax.random.normal(kx, (8, 1, 7, 7), dtype=jnp.float32)

    # Deterministic Conv2d-like weight init: U(-1/sqrt(49), 1/sqrt(49)).
    bound = 1.0 / np.sqrt(K * K)
    weight = jax.random.uniform(kw, (1, 1, K, K), dtype=jnp.float32,
                                minval=-bound, maxval=bound)

    y = simple_net_forward(x, weight)
    y = jax.block_until_ready(y)

    y_ref = _reference_forward(x, weight)
    assert y.shape == (8, 1, 7, 7)
    assert jnp.allclose(y, y_ref, atol=1e-4, rtol=1e-4), "mismatch vs lax conv reference"

    print("KERNEL_OK")
</pallas_src>

<mosaic_0001>
module attributes {stable_mosaic.version = 11 : i64} {
  func.func @_fused_conv_kernel(%arg0: i32, %arg1: memref<49x49xf32, #tpu.memory_space<vmem>>, %arg2: memref<49x128xf32, #tpu.memory_space<vmem>>, %arg3: memref<49x128xf32, #tpu.memory_space<vmem>>) attributes {dimension_semantics = [#tpu.dimension_semantics<parallel>], iteration_bounds = array<i64: 1>, scalar_prefetch = 0 : i64, scratch_operands = 0 : i64, tpu.core_type = #tpu.core_type<tc>, window_params = [{pipeline_mode = #tpu.pipeline_mode<synchronous>, transform_indices = @transform_0, window_bounds = array<i64: 49, 49>}, {transform_indices = @transform_1, window_bounds = array<i64: 49, 128>}, {transform_indices = @transform_2, window_bounds = array<i64: 49, 128>}]} {
    %c0 = arith.constant 0 : index
    %c0_0 = arith.constant 0 : index
    %0 = vector.load %arg1[%c0, %c0_0] : memref<49x49xf32, #tpu.memory_space<vmem>>, vector<49x49xf32>
    %c0_1 = arith.constant 0 : index
    %c0_2 = arith.constant 0 : index
    %1 = vector.load %arg2[%c0_1, %c0_2] : memref<49x128xf32, #tpu.memory_space<vmem>>, vector<49x128xf32>
    %cst = arith.constant dense<0.000000e+00> : vector<49x128xf32>
    %2 = tpu.matmul %0, %1, %cst {dimension_numbers = #tpu.dot_dimension_numbers<[1], [0], [0], [1], [0, 0, 1, 1], [], []>} : vector<49x49xf32>, vector<49x128xf32>, vector<49x128xf32> -> vector<49x128xf32>
    %c0_3 = arith.constant 0 : index
    %c0_4 = arith.constant 0 : index
    %3 = vector.load %arg3[%c0_3, %c0_4] : memref<49x128xf32, #tpu.memory_space<vmem>>, vector<49x128xf32>
    tpu.vector_store %arg3[%c0_3, %c0_4], %2 {strides = array<i32>} : memref<49x128xf32, #tpu.memory_space<vmem>>, vector<49x128xf32>,
    return
  }
  func.func @transform_0(%arg0: i32) -> (i32, i32) {
    %c0_i32 = arith.constant 0 : i32
    %c0_i32_0 = arith.constant 0 : i32
    %c0_i32_1 = arith.constant 0 : i32
    return %c0_i32, %c0_i32_0 : i32, i32
  }
  func.func @transform_1(%arg0: i32) -> (i32, i32) {
    %c0_i32 = arith.constant 0 : i32
    %c0_i32_0 = arith.constant 0 : i32
    return %c0_i32, %arg0 : i32, i32
  }
  func.func @transform_2(%arg0: i32) -> (i32, i32) {
    %c0_i32 = arith.constant 0 : i32
    %c0_i32_0 = arith.constant 0 : i32
    return %c0_i32, %arg0 : i32, i32
  }
}

</mosaic_0001>

<llo_original>
// kernel: simple_net_forward.1
$region0: #{simple_net_forward.1}
  #allocation0 [shape = 'u32[]', space=smem, size = 0x4, offset = 0x4, fixed_abs, tag = 'smem constant byte address 0x4 - core index']
  #allocation1 [shape = 'u32[144,128]{1,0:T(1,128)}', space=vmem, size = 0x12000, scoped, tag = 'internal scratch']
  %s0 = inlined_call_operand.vmem [shape: f32[49,49], index: 0, kind: input, shape index: {}]
  %s1 = inlined_call_operand.vmem [shape: f32[49,128], index: 1, kind: input, shape index: {}]
  %s2 = inlined_call_operand.vmem [shape: f32[49,128], index: 2, kind: output, shape index: {}]
  %s3 = sld [smem:[#allocation0]]
  $region18: #{simple_net_forward.1} parent=0
    _
  %s5 = ssub.s32 1, %s3
  %s6 = scalar_select 0, %s5, %s3
  // Predicated region
  $region2: #{simple_net_forward.1} parent=0 // pred_check
    _
  $region3: #{simple_net_forward.1} parent=0 // pred_check_branch
    %8 = sbr.rel (0) target = $region5
  $region4: #{simple_net_forward.1} parent=0 // pred_region
    _
  $region5: #{simple_net_forward.1} parent=0 // pred_fallthru
    _
  // Predicated region
  $region6: #{simple_net_forward.1} parent=0 // pred_check
    _
  $region7: #{simple_net_forward.1} parent=0 // pred_check_branch
    %10 = sbr.rel (0) target = $region9
  $region8: #{simple_net_forward.1} parent=0 // pred_region
    _
  $region9: #{simple_net_forward.1} parent=0 // pred_fallthru
    _
  %v11 = vld [vmem:[%s0] sm:$0xff]
  %v12 = vld [vmem:[%s0 + $0x8] sm:$0xff]
  %v13 = vld [vmem:[%s0 + $0x10] sm:$0xff]
  %v14 = vld [vmem:[%s0 + $0x18] sm:$0xff]
  %v15 = vld [vmem:[%s0 + $0x20] sm:$0xff]
  %v16 = vld [vmem:[%s0 + $0x28] sm:$0xff]
  %v17 = vld [vmem:[%s0 + $0x30] sm:$0x1]
  %v18 = vld [vmem:[%s1] sm:$0xff]
  %v19 = vld [vmem:[%s1 + $0x8] sm:$0xff]
  %v20 = vld [vmem:[%s1 + $0x10] sm:$0xff]
  %v21 = vld [vmem:[%s1 + $0x18] sm:$0xff]
  %v22 = vld [vmem:[%s1 + $0x20] sm:$0xff]
  %v23 = vld [vmem:[%s1 + $0x28] sm:$0xff]
  %v24 = vld [vmem:[%s1 + $0x30] sm:$0x1]
  %vm25 = vcmask 400384
  %v27 = vsel %vm25, %v11, 0
  %v30 = vsel %vm25, %v12, 0
  %v33 = vsel %vm25, %v13, 0
  %v36 = vsel %vm25, %v14, 0
  %v39 = vsel %vm25, %v15, 0
  %v42 = vsel %vm25, %v16, 0
  %v45 = vsel %vm25, %v17, 0
  %vm47 = vcmask 1040384
  %v49 = vsel %vm47, %v24, 0
  %51 = vmatprep.subr.mxu0 0.0
  %52 = vmatpush1.msra.mxu0 %v18
  %53 = vmatprep.subr.mxu0 0.0
  %54 = vmatpush1.msra.mxu0 %v19
  %55 = vmatprep.subr.mxu0 0.0
  %56 = vmatpush1.msra.mxu0 %v20
  %57 = vmatprep.subr.mxu0 0.0
  %58 = vmatpush1.msra.mxu0 %v21
  %59 = vmatprep.subr.mxu0 0.0
  %60 = vmatpush1.msra.mxu0 %v22
  %61 = vmatprep.subr.mxu0 0.0
  %62 = vmatpush1.msra.mxu0 %v23
  %63 = vmatprep.subr.mxu0 0.0
  %64 = vmatpush1.msra.mxu0 %v49
  %65 = vmatprep.subr.mxu0 0.0
  %66 = vmatpush1.msra.mxu0 0.0
  %67 = vmatprep.subr.mxu0 0.0
  %68 = vmatpush1.msra.mxu0 0.0
  %69 = vmatprep.subr.mxu0 0.0
  %70 = vmatpush1.msra.mxu0 0.0
  %71 = vmatprep.subr.mxu0 0.0
  %72 = vmatpush1.msra.mxu0 0.0
  %73 = vmatprep.subr.mxu0 0.0
  %74 = vmatpush1.msra.mxu0 0.0
  %75 = vmatprep.subr.mxu0 0.0
  %76 = vmatpush1.msra.mxu0 0.0
  %77 = vmatprep.subr.mxu0 0.0
  %78 = vmatpush1.msra.mxu0 0.0
  %79 = vmatprep.subr.mxu0 0.0
  %80 = vmatpush1.msra.mxu0 0.0
  %81 = vmatprep.subr.mxu0 0.0
  %82 = vmatpush1.msra.mxu0 0.0
  %83 = vmatprep.subr.mxu0 0.0
  %84 = vmatpush1.msra.mxu0 0.0
  %85 = vmatprep.subr.mxu0 0.0
  %86 = vmatpush1.msra.mxu0 0.0
  %87 = vmatprep.subr.mxu0 0.0
  %88 = vmatpush1.msra.mxu0 0.0
  %89 = vmatprep.subr.mxu0 0.0
  %90 = vmatpush1.msra.mxu0 0.0
  %91 = vmatprep.subr.mxu0 0.0
  %92 = vmatpush1.msra.mxu0 0.0
  %93 = vmatprep.subr.mxu0 0.0
  %94 = vmatpush1.msra.mxu0 0.0
  %95 = vmatprep.subr.mxu0 0.0
  %96 = vmatpush1.msra.mxu0 0.0
  %97 = vmatprep.subr.mxu0 0.0
  %98 = vmatpush1.msra.mxu0 0.0
  %99 = vmatprep.subr.mxu0 0.0
  %100 = vmatpush1.msra.mxu0 0.0
  %101 = vmatprep.subr.mxu0 0.0
  %102 = vmatpush1.msra.mxu0 0.0
  %103 = vmatprep.subr.mxu0 0.0
  %104 = vmatpush1.msra.mxu0 0.0
  %105 = vmatprep.subr.mxu0 0.0
  %106 = vmatpush1.msra.mxu0 0.0
  %107 = vmatprep.subr.mxu0 0.0
  %108 = vmatpush1.msra.mxu0 0.0
  %109 = vmatprep.subr.mxu0 0.0
  %110 = vmatpush1.msra.mxu0 0.0
  %111 = vmatprep.subr.mxu0 0.0
  %112 = vmatpush1.msra.mxu0 0.0
  %113 = vmatprep.subr.mxu0 0.0
  %114 = vmatpush1.msra.mxu0 0.0
  %115 = vmatprep.mubr.f32.mxu0 0.0
  %116 = vmatmul.mubr.f32.gmra.mrb[0].mxu0 %v27
  %v117 = vpop.f32.mrb[0].mxu0
  %v118 = vadd.f32 0.0, %v117
  %v119 = vpop.f32.mrb[0].mxu0
  %120 = vmatprep.mubr.f32.mxu0 0.0
  %121 = vmatmul.mubr.f32.gmra.mrb[0].mxu0 %v30
  %v122 = vpop.f32.mrb[0].mxu0
  %v123 = vadd.f32 0.0, %v122
  %v124 = vpop.f32.mrb[0].mxu0
  %125 = vmatprep.mubr.f32.mxu0 0.0
  %126 = vmatmul.mubr.f32.gmra.mrb[0].mxu0 %v33
  %v127 = vpop.f32.mrb[0].mxu0
  %v128 = vadd.f32 0.0, %v127
  %v129 = vpop.f32.mrb[0].mxu0
  %130 = vmatprep.mubr.f32.mxu0 0.0
  %131 = vmatmul.mubr.f32.gmra.mrb[0].mxu0 %v36
  %v132 = vpop.f32.mrb[0].mxu0
  %v133 = vadd.f32 0.0, %v132
  %v134 = vpop.f32.mrb[0].mxu0
  %135 = vmatprep.mubr.f32.mxu0 0.0
  %136 = vmatmul.mubr.f32.gmra.mrb[0].mxu0 %v39
  %v137 = vpop.f32.mrb[0].mxu0
  %v138 = vadd.f32 0.0, %v137
  %v139 = vpop.f32.mrb[0].mxu0
  %140 = vmatprep.mubr.f32.mxu0 0.0
  %141 = vmatmul.mubr.f32.gmra.mrb[0].mxu0 %v42
  %v142 = vpop.f32.mrb[0].mxu0
  %v143 = vadd.f32 0.0, %v142
  %v144 = vpop.f32.mrb[0].mxu0
  %145 = vmatprep.mubr.f32.mxu0 0.0
  %146 = vmatmul.mubr.f32.gmra.mrb[0].mxu0 %v45
  %v147 = vpop.f32.mrb[0].mxu0
  %v148 = vadd.f32 0.0, %v147
  %v149 = vpop.f32.mrb[0].mxu0
  %150 = vdwg.mxu0
  %151 = vst [vmem:[%s2] sm:$0xff] %v118
  %152 = vst [vmem:[%s2 + $0x8] sm:$0xff] %v123
  %153 = vst [vmem:[%s2 + $0x10] sm:$0xff] %v128
  %154 = vst [vmem:[%s2 + $0x18] sm:$0xff] %v133
  %155 = vst [vmem:[%s2 + $0x20] sm:$0xff] %v138
  %156 = vst [vmem:[%s2 + $0x28] sm:$0xff] %v143
  %157 = vst [vmem:[%s2 + $0x30] sm:$0x1] %v148
  // Predicated region
  $region10: #{simple_net_forward.1} parent=0 // pred_check
    _
  $region11: #{simple_net_forward.1} parent=0 // pred_check_branch
    %159 = sbr.rel (0) target = $region13
  $region12: #{simple_net_forward.1} parent=0 // pred_region
    _
  $region13: #{simple_net_forward.1} parent=0 // pred_fallthru
    _
  // Predicated region
  $region14: #{simple_net_forward.1} parent=0 // pred_check
    _
  $region15: #{simple_net_forward.1} parent=0 // pred_check_branch
    %161 = sbr.rel (0) target = $region17
  $region16: #{simple_net_forward.1} parent=0 // pred_region
    _
  $region17: #{simple_net_forward.1} parent=0 // pred_fallthru
    _

</llo_original>
